<compile_context>
chip_gen: v5e
topology: v5e:2x2
jax: 0.10.0
libtpu: 0.0.40
codegen_flags: <defaults>
</compile_context>

<pallas_src>
import functools

import numpy as np
import jax
import jax.numpy as jnp
from jax import lax
from jax.experimental import pallas as pl
from jax.experimental.pallas import tpu as pltpu

# ----- module hyper-parameters (small, synthetic) -----
NUM_RNA_TYPE = 8          # hard-coded to 8 in __init__
NUM_MOD_TYPE = 3
NUM_ATOM_TYPE = 10
NUM_ATOM_POS = 8
ATOM_PAD_ID = 0           # stand-in for VOCAB.get_atom_pad_idx()
RNA_EMBED = 32
ATOM_EMBED = 32
D_OUT = RNA_EMBED + ATOM_EMBED          # 64
N_CHANNEL = 4
EPS = 1e-10

# combined-vocab layout (block-diagonal fused table)
OFF_RNA = 0
OFF_MOD = OFF_RNA + NUM_RNA_TYPE        # 8
OFF_ATOM = OFF_MOD + NUM_MOD_TYPE       # 11
OFF_APOS = OFF_ATOM + NUM_ATOM_TYPE     # 21
V_TOT = OFF_APOS + NUM_ATOM_POS         # 29
V_PAD = 32                              # pad fused vocab to 32 rows

# packed id column layout: [S, RP, SM, A(4), AP(4), pad...] -> width 16
IDS_WIDTH = 16
COL_S, COL_RP, COL_SM, COL_A0, COL_AP0 = 0, 1, 2, 3, 7

PE_ROWS = 8                             # sublane-padded constant block


def _round_up(x, m):
    return ((x + m - 1) // m) * m


def _embedding_kernel(ids_ref, tbl_ref, pe_ref, out_ref):
    tn = ids_ref.shape[0]
    f32 = jnp.float32

    ids = ids_ref[...]                                    # (tn, 16) int32
    s = ids[:, COL_S:COL_S + 1]                           # (tn, 1)
    rp = ids[:, COL_RP:COL_RP + 1]
    sm = ids[:, COL_SM:COL_SM + 1]

    iota = lax.broadcasted_iota(jnp.int32, (tn, V_PAD), 1)

    # --- rna-type + modification one-hots (weight 1) ---
    oh = (s == iota).astype(f32) + ((sm + OFF_MOD) == iota).astype(f32)

    # --- atom masked-mean weights: mask_c / (sum_c mask_c + eps) ---
    cnt = jnp.zeros((tn, 1), f32)
    for c in range(N_CHANNEL):
        ap_c = ids[:, COL_AP0 + c:COL_AP0 + c + 1]
        cnt = cnt + (ap_c != ATOM_PAD_ID).astype(f32)
    inv_denom = 1.0 / (cnt + EPS)

    for c in range(N_CHANNEL):
        a_c = ids[:, COL_A0 + c:COL_A0 + c + 1]
        ap_c = ids[:, COL_AP0 + c:COL_AP0 + c + 1]
        w = (ap_c != ATOM_PAD_ID).astype(f32) * inv_denom  # (tn, 1)
        oh = oh + w * ((a_c + OFF_ATOM) == iota).astype(f32)
        oh = oh + w * ((ap_c + OFF_APOS) == iota).astype(f32)

    # --- single fused MXU push: (tn, 32) x (32, 64) -> (tn, 64) ---
    emb = jnp.dot(oh, tbl_ref[...], preferred_element_type=f32)

    # --- sinusoidal positional embedding: one sin over the full 64 lanes
    # (theta/phase are zero in the atom half, so sin(0) = 0 there) ---
    theta = pe_ref[0:1, :]                                # (1, 64)
    phase = pe_ref[1:2, :]                                # (1, 64)
    pe = jnp.sin(rp.astype(f32) * theta + phase)          # (tn, 64)

    # one lane-dense store of the whole [rna | atom] tile
    out_ref[...] = (emb + pe).astype(out_ref.dtype)


@functools.partial(jax.jit, static_argnames=("tile_n",))
def _nucleic_acid_embedding_impl(S, RP, A, AP, SM, params, *, tile_n):
    N = S.shape[0]

    # --- pack the five integer id inputs into one (N, 16) int32 array ---
    ids = jnp.zeros((N, IDS_WIDTH), jnp.int32)
    ids = ids.at[:, COL_S].set(S.astype(jnp.int32))
    ids = ids.at[:, COL_RP].set(RP.astype(jnp.int32))
    ids = ids.at[:, COL_SM].set(SM.astype(jnp.int32))
    ids = ids.at[:, COL_A0:COL_A0 + N_CHANNEL].set(A.astype(jnp.int32))
    ids = ids.at[:, COL_AP0:COL_AP0 + N_CHANNEL].set(AP.astype(jnp.int32))

    # --- fused block-diagonal embedding table (V_PAD, 64) ---
    tbl = jnp.zeros((V_PAD, D_OUT), jnp.float32)
    tbl = tbl.at[OFF_RNA:OFF_RNA + NUM_RNA_TYPE, :RNA_EMBED].set(
        params['rna_tbl'].astype(jnp.float32))
    tbl = tbl.at[OFF_MOD:OFF_MOD + NUM_MOD_TYPE, :RNA_EMBED].set(
        params['mod_tbl'].astype(jnp.float32))
    tbl = tbl.at[OFF_ATOM:OFF_ATOM + NUM_ATOM_TYPE, RNA_EMBED:].set(
        params['atom_tbl'].astype(jnp.float32))
    tbl = tbl.at[OFF_APOS:OFF_APOS + NUM_ATOM_POS, RNA_EMBED:].set(
        params['atom_pos_tbl'].astype(jnp.float32))

    # --- hoisted sinusoidal constants, padded to full 64 lanes / 8 sublanes ---
    j = np.arange(D_OUT)
    theta_np = np.where(j < RNA_EMBED,
                        np.power(10000.0, -2.0 * (j // 2) / RNA_EMBED),
                        0.0)
    phase_np = np.where((j < RNA_EMBED) & (j % 2 == 1), np.pi / 2.0, 0.0)
    pe_np = np.zeros((PE_ROWS, D_OUT), np.float32)
    pe_np[0, :] = theta_np
    pe_np[1, :] = phase_np
    pe_consts = jnp.asarray(pe_np)                        # (8, 64)

    # --- tiling: big tiles, pad N up to a multiple of the tile ---
    eff_tile = min(int(tile_n), _round_up(N, 8))
    eff_tile = max(8, (eff_tile // 8) * 8)
    n_pad = _round_up(N, eff_tile)
    if n_pad != N:
        ids = jnp.pad(ids, ((0, n_pad - N), (0, 0)))      # padded rows: AP==pad
    grid = (n_pad // eff_tile,)

    out = pl.pallas_call(
        _embedding_kernel,
        out_shape=jax.ShapeDtypeStruct((n_pad, D_OUT), jnp.float32),
        grid_spec=pltpu.PrefetchScalarGridSpec(
            num_scalar_prefetch=0,
            grid=grid,
            in_specs=[
                pl.BlockSpec((eff_tile, IDS_WIDTH), lambda i: (i, 0)),
                pl.BlockSpec((V_PAD, D_OUT), lambda i: (0, 0)),
                pl.BlockSpec((PE_ROWS, D_OUT), lambda i: (0, 0)),
            ],
            out_specs=pl.BlockSpec((eff_tile, D_OUT), lambda i: (i, 0)),
        ),
        compiler_params=pltpu.CompilerParams(
            dimension_semantics=("parallel",)),
    )(ids, tbl, pe_consts)
    return out[:N]


def nucleic_acid_embedding(S, RP, A, AP, SM, params, *, tile_n=256):
    return _nucleic_acid_embedding_impl(S, RP, A, AP, SM, params,
                                        tile_n=tile_n)


# ----- plain-JAX reference for the correctness check -----
def _sinusoidal_ref(positions, output_dim):
    idx = jnp.arange(output_dim // 2, dtype=jnp.float32)
    theta = jnp.power(10000.0, -2.0 * idx / output_dim)
    ang = positions.astype(jnp.float32)[:, None] * theta[None, :]
    emb = jnp.stack([jnp.sin(ang), jnp.cos(ang)], axis=-1)
    return emb.reshape(-1, output_dim)


def _reference(S, RP, A, AP, SM, p):
    rna = p['rna_tbl'][S] + _sinusoidal_ref(RP, RNA_EMBED) + p['mod_tbl'][SM]
    atom_e = p['atom_tbl'][A] + p['atom_pos_tbl'][AP]
    not_pad = (AP != ATOM_PAD_ID)
    denom = jnp.sum(not_pad, axis=-1, keepdims=True).astype(jnp.float32) + EPS
    atom = jnp.sum(atom_e * not_pad[..., None], axis=1) / denom
    return jnp.concatenate([rna, atom], axis=-1)


if __name__ == "__main__":
    key = jax.random.PRNGKey(0)
    k1, k2, k3, k4, k5 = jax.random.split(key, 5)

    # deterministic synthetic parameters (nn.Embedding-style N(0,1) init)
    params = {
        'rna_tbl': jax.random.normal(k1, (NUM_RNA_TYPE, RNA_EMBED), jnp.float32),
        'mod_tbl': jax.random.normal(k2, (NUM_MOD_TYPE, RNA_EMBED), jnp.float32),
        'atom_tbl': jax.random.normal(k3, (NUM_ATOM_TYPE, ATOM_EMBED), jnp.float32),
        'atom_pos_tbl': jax.random.normal(k4, (NUM_ATOM_POS, ATOM_EMBED), jnp.float32),
    }

    ok = True
    for N in (16, 200):   # small, plus a non-multiple-of-8 padding exercise
        ka, kb, kc, kd, ke = jax.random.split(jax.random.fold_in(k5, N), 5)
        S = jax.random.randint(ka, (N,), 0, NUM_RNA_TYPE, jnp.int32)
        RP = jax.random.randint(kb, (N,), 0, 50, jnp.int32)
        A = jax.random.randint(kc, (N, N_CHANNEL), 0, NUM_ATOM_TYPE, jnp.int32)
        AP = jax.random.randint(kd, (N, N_CHANNEL), 0, NUM_ATOM_POS, jnp.int32)
        SM = jax.random.randint(ke, (N,), 0, NUM_MOD_TYPE, jnp.int32)

        out = nucleic_acid_embedding(S, RP, A, AP, SM, params)
        out = jax.block_until_ready(out)

        ref = _reference(S, RP, A, AP, SM, params)
        ok = ok and (out.shape == (N, D_OUT))
        ok = ok and bool(jnp.allclose(out, ref, atol=1e-4, rtol=1e-4))

    assert ok
    print("KERNEL_OK")
</pallas_src>

<mosaic_0001>
module attributes {stable_mosaic.version = 11 : i64} {
  func.func @_embedding_kernel(%arg0: i32, %arg1: memref<16x16xi32, #tpu.memory_space<vmem>>, %arg2: memref<32x64xf32, #tpu.memory_space<vmem>>, %arg3: memref<8x64xf32, #tpu.memory_space<vmem>>, %arg4: memref<16x64xf32, #tpu.memory_space<vmem>>) attributes {dimension_semantics = [#tpu.dimension_semantics<parallel>], iteration_bounds = array<i64: 1>, scalar_prefetch = 0 : i64, scratch_operands = 0 : i64, tpu.core_type = #tpu.core_type<tc>, window_params = [{transform_indices = @transform_0, window_bounds = array<i64: 16, 16>}, {pipeline_mode = #tpu.pipeline_mode<synchronous>, transform_indices = @transform_1, window_bounds = array<i64: 32, 64>}, {pipeline_mode = #tpu.pipeline_mode<synchronous>, transform_indices = @transform_2, window_bounds = array<i64: 8, 64>}, {transform_indices = @transform_3, window_bounds = array<i64: 16, 64>}]} {
    %c0 = arith.constant 0 : index
    %c0_0 = arith.constant 0 : index
    %0 = vector.load %arg1[%c0, %c0_0] : memref<16x16xi32, #tpu.memory_space<vmem>>, vector<16x16xi32>
    %1 = vector.extract_strided_slice %0 {offsets = [0, 0], sizes = [16, 1], strides = [1, 1]} : vector<16x16xi32> to vector<16x1xi32>
    %2 = vector.extract_strided_slice %0 {offsets = [0, 1], sizes = [16, 1], strides = [1, 1]} : vector<16x16xi32> to vector<16x1xi32>
    %3 = vector.extract_strided_slice %0 {offsets = [0, 2], sizes = [16, 1], strides = [1, 1]} : vector<16x16xi32> to vector<16x1xi32>
    %4 = tpu.iota {dimensions = array<i32: 1>} : vector<16x32xi32>
    %5 = vector.broadcast %1 : vector<16x1xi32> to vector<16x32xi32>
    %6 = arith.cmpi eq, %5, %4 : vector<16x32xi32>
    %7 = arith.extui %6 : vector<16x32xi1> to vector<16x32xi32>
    %8 = arith.sitofp %7 : vector<16x32xi32> to vector<16x32xf32>
    %c8_i32 = arith.constant 8 : i32
    %9 = vector.broadcast %c8_i32 : i32 to vector<16x1xi32>
    %10 = arith.addi %3, %9 : vector<16x1xi32>
    %11 = vector.broadcast %10 : vector<16x1xi32> to vector<16x32xi32>
    %12 = arith.cmpi eq, %11, %4 : vector<16x32xi32>
    %13 = arith.extui %12 : vector<16x32xi1> to vector<16x32xi32>
    %14 = arith.sitofp %13 : vector<16x32xi32> to vector<16x32xf32>
    %15 = arith.addf %8, %14 : vector<16x32xf32>
    %cst = arith.constant 0.000000e+00 : f32
    %16 = vector.broadcast %cst : f32 to vector<16x1xf32>
    %17 = vector.extract_strided_slice %0 {offsets = [0, 7], sizes = [16, 1], strides = [1, 1]} : vector<16x16xi32> to vector<16x1xi32>
    %c0_i32 = arith.constant 0 : i32
    %18 = vector.broadcast %c0_i32 : i32 to vector<16x1xi32>
    %19 = arith.cmpi ne, %17, %18 : vector<16x1xi32>
    %20 = arith.extui %19 : vector<16x1xi1> to vector<16x1xi32>
    %21 = arith.sitofp %20 : vector<16x1xi32> to vector<16x1xf32>
    %22 = arith.addf %16, %21 : vector<16x1xf32>
    %23 = vector.extract_strided_slice %0 {offsets = [0, 8], sizes = [16, 1], strides = [1, 1]} : vector<16x16xi32> to vector<16x1xi32>
    %c0_i32_1 = arith.constant 0 : i32
    %24 = vector.broadcast %c0_i32_1 : i32 to vector<16x1xi32>
    %25 = arith.cmpi ne, %23, %24 : vector<16x1xi32>
    %26 = arith.extui %25 : vector<16x1xi1> to vector<16x1xi32>
    %27 = arith.sitofp %26 : vector<16x1xi32> to vector<16x1xf32>
    %28 = arith.addf %22, %27 : vector<16x1xf32>
    %29 = vector.extract_strided_slice %0 {offsets = [0, 9], sizes = [16, 1], strides = [1, 1]} : vector<16x16xi32> to vector<16x1xi32>
    %c0_i32_2 = arith.constant 0 : i32
    %30 = vector.broadcast %c0_i32_2 : i32 to vector<16x1xi32>
    %31 = arith.cmpi ne, %29, %30 : vector<16x1xi32>
    %32 = arith.extui %31 : vector<16x1xi1> to vector<16x1xi32>
    %33 = arith.sitofp %32 : vector<16x1xi32> to vector<16x1xf32>
    %34 = arith.addf %28, %33 : vector<16x1xf32>
    %35 = vector.extract_strided_slice %0 {offsets = [0, 10], sizes = [16, 1], strides = [1, 1]} : vector<16x16xi32> to vector<16x1xi32>
    %c0_i32_3 = arith.constant 0 : i32
    %36 = vector.broadcast %c0_i32_3 : i32 to vector<16x1xi32>
    %37 = arith.cmpi ne, %35, %36 : vector<16x1xi32>
    %38 = arith.extui %37 : vector<16x1xi1> to vector<16x1xi32>
    %39 = arith.sitofp %38 : vector<16x1xi32> to vector<16x1xf32>
    %40 = arith.addf %34, %39 : vector<16x1xf32>
    %cst_4 = arith.constant 1.000000e-10 : f32
    %41 = vector.broadcast %cst_4 : f32 to vector<16x1xf32>
    %42 = arith.addf %40, %41 : vector<16x1xf32>
    %cst_5 = arith.constant 1.000000e+00 : f32
    %43 = vector.broadcast %cst_5 : f32 to vector<16x1xf32>
    %44 = arith.divf %43, %42 : vector<16x1xf32>
    %45 = vector.extract_strided_slice %0 {offsets = [0, 3], sizes = [16, 1], strides = [1, 1]} : vector<16x16xi32> to vector<16x1xi32>
    %46 = vector.extract_strided_slice %0 {offsets = [0, 7], sizes = [16, 1], strides = [1, 1]} : vector<16x16xi32> to vector<16x1xi32>
    %c0_i32_6 = arith.constant 0 : i32
    %47 = vector.broadcast %c0_i32_6 : i32 to vector<16x1xi32>
    %48 = arith.cmpi ne, %46, %47 : vector<16x1xi32>
    %49 = arith.extui %48 : vector<16x1xi1> to vector<16x1xi32>
    %50 = arith.sitofp %49 : vector<16x1xi32> to vector<16x1xf32>
    %51 = arith.mulf %50, %44 : vector<16x1xf32>
    %c11_i32 = arith.constant 11 : i32
    %52 = vector.broadcast %c11_i32 : i32 to vector<16x1xi32>
    %53 = arith.addi %45, %52 : vector<16x1xi32>
    %54 = vector.broadcast %53 : vector<16x1xi32> to vector<16x32xi32>
    %55 = arith.cmpi eq, %54, %4 : vector<16x32xi32>
    %56 = arith.extui %55 : vector<16x32xi1> to vector<16x32xi32>
    %57 = arith.sitofp %56 : vector<16x32xi32> to vector<16x32xf32>
    %58 = vector.broadcast %51 : vector<16x1xf32> to vector<16x32xf32>
    %59 = arith.mulf %58, %57 : vector<16x32xf32>
    %60 = arith.addf %15, %59 : vector<16x32xf32>
    %c21_i32 = arith.constant 21 : i32
    %61 = vector.broadcast %c21_i32 : i32 to vector<16x1xi32>
    %62 = arith.addi %46, %61 : vector<16x1xi32>
    %63 = vector.broadcast %62 : vector<16x1xi32> to vector<16x32xi32>
    %64 = arith.cmpi eq, %63, %4 : vector<16x32xi32>
    %65 = arith.extui %64 : vector<16x32xi1> to vector<16x32xi32>
    %66 = arith.sitofp %65 : vector<16x32xi32> to vector<16x32xf32>
    %67 = vector.broadcast %51 : vector<16x1xf32> to vector<16x32xf32>
    %68 = arith.mulf %67, %66 : vector<16x32xf32>
    %69 = arith.addf %60, %68 : vector<16x32xf32>
    %70 = vector.extract_strided_slice %0 {offsets = [0, 4], sizes = [16, 1], strides = [1, 1]} : vector<16x16xi32> to vector<16x1xi32>
    %71 = vector.extract_strided_slice %0 {offsets = [0, 8], sizes = [16, 1], strides = [1, 1]} : vector<16x16xi32> to vector<16x1xi32>
    %c0_i32_7 = arith.constant 0 : i32
    %72 = vector.broadcast %c0_i32_7 : i32 to vector<16x1xi32>
    %73 = arith.cmpi ne, %71, %72 : vector<16x1xi32>
    %74 = arith.extui %73 : vector<16x1xi1> to vector<16x1xi32>
    %75 = arith.sitofp %74 : vector<16x1xi32> to vector<16x1xf32>
    %76 = arith.mulf %75, %44 : vector<16x1xf32>
    %c11_i32_8 = arith.constant 11 : i32
    %77 = vector.broadcast %c11_i32_8 : i32 to vector<16x1xi32>
    %78 = arith.addi %70, %77 : vector<16x1xi32>
    %79 = vector.broadcast %78 : vector<16x1xi32> to vector<16x32xi32>
    %80 = arith.cmpi eq, %79, %4 : vector<16x32xi32>
    %81 = arith.extui %80 : vector<16x32xi1> to vector<16x32xi32>
    %82 = arith.sitofp %81 : vector<16x32xi32> to vector<16x32xf32>
    %83 = vector.broadcast %76 : vector<16x1xf32> to vector<16x32xf32>
    %84 = arith.mulf %83, %82 : vector<16x32xf32>
    %85 = arith.addf %69, %84 : vector<16x32xf32>
    %c21_i32_9 = arith.constant 21 : i32
    %86 = vector.broadcast %c21_i32_9 : i32 to vector<16x1xi32>
    %87 = arith.addi %71, %86 : vector<16x1xi32>
    %88 = vector.broadcast %87 : vector<16x1xi32> to vector<16x32xi32>
    %89 = arith.cmpi eq, %88, %4 : vector<16x32xi32>
    %90 = arith.extui %89 : vector<16x32xi1> to vector<16x32xi32>
    %91 = arith.sitofp %90 : vector<16x32xi32> to vector<16x32xf32>
    %92 = vector.broadcast %76 : vector<16x1xf32> to vector<16x32xf32>
    %93 = arith.mulf %92, %91 : vector<16x32xf32>
    %94 = arith.addf %85, %93 : vector<16x32xf32>
    %95 = vector.extract_strided_slice %0 {offsets = [0, 5], sizes = [16, 1], strides = [1, 1]} : vector<16x16xi32> to vector<16x1xi32>
    %96 = vector.extract_strided_slice %0 {offsets = [0, 9], sizes = [16, 1], strides = [1, 1]} : vector<16x16xi32> to vector<16x1xi32>
    %c0_i32_10 = arith.constant 0 : i32
    %97 = vector.broadcast %c0_i32_10 : i32 to vector<16x1xi32>
    %98 = arith.cmpi ne, %96, %97 : vector<16x1xi32>
    %99 = arith.extui %98 : vector<16x1xi1> to vector<16x1xi32>
    %100 = arith.sitofp %99 : vector<16x1xi32> to vector<16x1xf32>
    %101 = arith.mulf %100, %44 : vector<16x1xf32>
    %c11_i32_11 = arith.constant 11 : i32
    %102 = vector.broadcast %c11_i32_11 : i32 to vector<16x1xi32>
    %103 = arith.addi %95, %102 : vector<16x1xi32>
    %104 = vector.broadcast %103 : vector<16x1xi32> to vector<16x32xi32>
    %105 = arith.cmpi eq, %104, %4 : vector<16x32xi32>
    %106 = arith.extui %105 : vector<16x32xi1> to vector<16x32xi32>
    %107 = arith.sitofp %106 : vector<16x32xi32> to vector<16x32xf32>
    %108 = vector.broadcast %101 : vector<16x1xf32> to vector<16x32xf32>
    %109 = arith.mulf %108, %107 : vector<16x32xf32>
    %110 = arith.addf %94, %109 : vector<16x32xf32>
    %c21_i32_12 = arith.constant 21 : i32
    %111 = vector.broadcast %c21_i32_12 : i32 to vector<16x1xi32>
    %112 = arith.addi %96, %111 : vector<16x1xi32>
    %113 = vector.broadcast %112 : vector<16x1xi32> to vector<16x32xi32>
    %114 = arith.cmpi eq, %113, %4 : vector<16x32xi32>
    %115 = arith.extui %114 : vector<16x32xi1> to vector<16x32xi32>
    %116 = arith.sitofp %115 : vector<16x32xi32> to vector<16x32xf32>
    %117 = vector.broadcast %101 : vector<16x1xf32> to vector<16x32xf32>
    %118 = arith.mulf %117, %116 : vector<16x32xf32>
    %119 = arith.addf %110, %118 : vector<16x32xf32>
    %120 = vector.extract_strided_slice %0 {offsets = [0, 6], sizes = [16, 1], strides = [1, 1]} : vector<16x16xi32> to vector<16x1xi32>
    %121 = vector.extract_strided_slice %0 {offsets = [0, 10], sizes = [16, 1], strides = [1, 1]} : vector<16x16xi32> to vector<16x1xi32>
    %c0_i32_13 = arith.constant 0 : i32
    %122 = vector.broadcast %c0_i32_13 : i32 to vector<16x1xi32>
    %123 = arith.cmpi ne, %121, %122 : vector<16x1xi32>
    %124 = arith.extui %123 : vector<16x1xi1> to vector<16x1xi32>
    %125 = arith.sitofp %124 : vector<16x1xi32> to vector<16x1xf32>
    %126 = arith.mulf %125, %44 : vector<16x1xf32>
    %c11_i32_14 = arith.constant 11 : i32
    %127 = vector.broadcast %c11_i32_14 : i32 to vector<16x1xi32>
    %128 = arith.addi %120, %127 : vector<16x1xi32>
    %129 = vector.broadcast %128 : vector<16x1xi32> to vector<16x32xi32>
    %130 = arith.cmpi eq, %129, %4 : vector<16x32xi32>
    %131 = arith.extui %130 : vector<16x32xi1> to vector<16x32xi32>
    %132 = arith.sitofp %131 : vector<16x32xi32> to vector<16x32xf32>
    %133 = vector.broadcast %126 : vector<16x1xf32> to vector<16x32xf32>
    %134 = arith.mulf %133, %132 : vector<16x32xf32>
    %135 = arith.addf %119, %134 : vector<16x32xf32>
    %c21_i32_15 = arith.constant 21 : i32
    %136 = vector.broadcast %c21_i32_15 : i32 to vector<16x1xi32>
    %137 = arith.addi %121, %136 : vector<16x1xi32>
    %138 = vector.broadcast %137 : vector<16x1xi32> to vector<16x32xi32>
    %139 = arith.cmpi eq, %138, %4 : vector<16x32xi32>
    %140 = arith.extui %139 : vector<16x32xi1> to vector<16x32xi32>
    %141 = arith.sitofp %140 : vector<16x32xi32> to vector<16x32xf32>
    %142 = vector.broadcast %126 : vector<16x1xf32> to vector<16x32xf32>
    %143 = arith.mulf %142, %141 : vector<16x32xf32>
    %144 = arith.addf %135, %143 : vector<16x32xf32>
    %c0_16 = arith.constant 0 : index
    %c0_17 = arith.constant 0 : index
    %145 = vector.load %arg2[%c0_16, %c0_17] : memref<32x64xf32, #tpu.memory_space<vmem>>, vector<32x64xf32>
    %cst_18 = arith.constant dense<0.000000e+00> : vector<16x64xf32>
    %146 = tpu.matmul %144, %145, %cst_18 {dimension_numbers = #tpu.dot_dimension_numbers<[1], [0], [0], [1], [0, 0, 1, 1], [], []>} : vector<16x32xf32>, vector<32x64xf32>, vector<16x64xf32> -> vector<16x64xf32>
    %c0_19 = arith.constant 0 : index
    %c0_20 = arith.constant 0 : index
    %147 = vector.load %arg3[%c0_19, %c0_20] : memref<8x64xf32, #tpu.memory_space<vmem>>, vector<1x64xf32>
    %c1 = arith.constant 1 : index
    %c0_21 = arith.constant 0 : index
    %148 = vector.load %arg3[%c1, %c0_21] : memref<8x64xf32, #tpu.memory_space<vmem>>, vector<1x64xf32>
    %149 = arith.sitofp %2 : vector<16x1xi32> to vector<16x1xf32>
    %150 = vector.broadcast %149 : vector<16x1xf32> to vector<16x64xf32>
    %151 = vector.broadcast %147 : vector<1x64xf32> to vector<16x64xf32>
    %152 = arith.mulf %150, %151 : vector<16x64xf32>
    %153 = vector.broadcast %148 : vector<1x64xf32> to vector<16x64xf32>
    %154 = arith.addf %152, %153 : vector<16x64xf32>
    %155 = math.sin %154 : vector<16x64xf32>
    %156 = arith.addf %146, %155 : vector<16x64xf32>
    %c0_22 = arith.constant 0 : index
    %c0_23 = arith.constant 0 : index
    %157 = vector.load %arg4[%c0_22, %c0_23] : memref<16x64xf32, #tpu.memory_space<vmem>>, vector<16x64xf32>
    tpu.vector_store %arg4[%c0_22, %c0_23], %156 {strides = array<i32>} : memref<16x64xf32, #tpu.memory_space<vmem>>, vector<16x64xf32>,
    return
  }
  func.func @transform_0(%arg0: i32) -> (i32, i32) {
    %c0_i32 = arith.constant 0 : i32
    %c0_i32_0 = arith.constant 0 : i32
    return %arg0, %c0_i32 : i32, i32
  }
  func.func @transform_1(%arg0: i32) -> (i32, i32) {
    %c0_i32 = arith.constant 0 : i32
    %c0_i32_0 = arith.constant 0 : i32
    %c0_i32_1 = arith.constant 0 : i32
    return %c0_i32, %c0_i32_0 : i32, i32
  }
  func.func @transform_2(%arg0: i32) -> (i32, i32) {
    %c0_i32 = arith.constant 0 : i32
    %c0_i32_0 = arith.constant 0 : i32
    %c0_i32_1 = arith.constant 0 : i32
    return %c0_i32, %c0_i32_0 : i32, i32
  }
  func.func @transform_3(%arg0: i32) -> (i32, i32) {
    %c0_i32 = arith.constant 0 : i32
    %c0_i32_0 = arith.constant 0 : i32
    return %arg0, %c0_i32 : i32, i32
  }
}

</mosaic_0001>

<llo_original>
// kernel: _nucleic_acid_embedding_impl.1
$region0: #{_nucleic_acid_embedding_impl.1}
  #allocation0 [shape = 'u32[]', space=smem, size = 0x4, offset = 0x4, fixed_abs, tag = 'smem constant byte address 0x4 - core index']
  #allocation1 [shape = 'u32[72,128]{1,0:T(1,128)}', space=vmem, size = 0x9000, scoped, tag = 'internal scratch']
  %s0 = inlined_call_operand.vmem [shape: s32[16,16], index: 0, kind: input, shape index: {}]
  %s1 = inlined_call_operand.vmem [shape: f32[32,64], index: 1, kind: input, shape index: {}]
  %s2 = inlined_call_operand.vmem [shape: f32[8,64], index: 2, kind: input, shape index: {}]
  %s3 = inlined_call_operand.hbm [shape: f32[16,64], index: 3, kind: output, shape index: {}]
  %s4 = sld [smem:[#allocation0]]
  $region22: #{_nucleic_acid_embedding_impl.1} parent=0
    _
  %s6 = ssub.s32 1, %s4
  %s7 = scalar_select 0, %s6, %s4
  $region1: #{_nucleic_acid_embedding_impl.1} parent=0
    #allocation2 [shape = 'u8[8192]{0}', space=vmem, size = 0x2000, scoped, tag = 'output window, operand 0, single buffered']
    #allocation3 [shape = 's32[1]{0}', space=sflag, size = 0x4, scoped, tag = 'scoped memory for _nucleic_acid_embedding_impl.1']
    %8 = vsyncpa [#allocation3], 0
    // Predicated region
    $region2: #{_nucleic_acid_embedding_impl.1} parent=1 // pred_check
      _
    $region3: #{_nucleic_acid_embedding_impl.1} parent=1 // pred_check_branch
      %10 = sbr.rel (0) target = $region5
    $region4: #{_nucleic_acid_embedding_impl.1} parent=1 // pred_region
      _
    $region5: #{_nucleic_acid_embedding_impl.1} parent=1 // pred_fallthru
      _
    // Predicated region
    $region6: #{_nucleic_acid_embedding_impl.1} parent=1 // pred_check
      _
    $region7: #{_nucleic_acid_embedding_impl.1} parent=1 // pred_check_branch
      %12 = sbr.rel (0) target = $region9
    $region8: #{_nucleic_acid_embedding_impl.1} parent=1 // pred_region
      _
    $region9: #{_nucleic_acid_embedding_impl.1} parent=1 // pred_fallthru
      _
    // Predicated region
    $region10: #{_nucleic_acid_embedding_impl.1} parent=1 // pred_check
      _
    $region11: #{_nucleic_acid_embedding_impl.1} parent=1 // pred_check_branch
      %14 = sbr.rel (0) target = $region13
    $region12: #{_nucleic_acid_embedding_impl.1} parent=1 // pred_region
      _
    $region13: #{_nucleic_acid_embedding_impl.1} parent=1 // pred_fallthru
      _
    %v15 = vld [vmem:[%s0] sm:$0xff]
    %v16 = vld [vmem:[%s0 + $0x8] sm:$0xff]
    %v17 = vlaneseq
    %v18 = vand.u32 %v17, 127
    %19 = vset.pattern.permute.xlu0 0
    %20 = vperm.xlu0 %19, %v15
    %v21 = vpop.permute.xlu0 %20
    %22 = vset.pattern.permute.xlu0 0
    %23 = vperm.xlu0 %22, %v16
    %v24 = vpop.permute.xlu0 %23
    %vm25 = vcmp.eq.s32.totalorder %v21, %v18
    %vm26 = vcmp.eq.s32.totalorder %v24, %v18
    %v27 = vsel %vm25, 1, 0
    %v28 = vsel %vm26, 1, 0
    %v29 = vcvt.s32.f32 %v27
    %v30 = vcvt.s32.f32 %v28
    %v31 = vadd.s32 %v15, 8
    %v32 = vadd.s32 %v16, 8
    %33 = vset.pattern.permute.xlu0 2
    %34 = vperm.xlu0 %33, %v31
    %v35 = vpop.permute.xlu0 %34
    %36 = vset.pattern.permute.xlu0 2
    %37 = vperm.xlu0 %36, %v32
    %v38 = vpop.permute.xlu0 %37
    %vm39 = vcmp.eq.s32.totalorder %v35, %v18
    %vm40 = vcmp.eq.s32.totalorder %v38, %v18
    %v41 = vsel %vm39, 1, 0
    %v42 = vsel %vm40, 1, 0
    %v43 = vcvt.s32.f32 %v41
    %v44 = vcvt.s32.f32 %v42
    %v45 = vadd.f32 %v29, %v43
    %v46 = vadd.f32 %v30, %v44
    %vm47 = vcmp.ne.s32.totalorder %v15, 0
    %vm48 = vcmp.ne.s32.totalorder %v16, 0
    %v49 = vsel %vm47, 1, 0
    %v50 = vsel %vm48, 1, 0
    %v51 = vcvt.s32.f32 %v49
    %v52 = vcvt.s32.f32 %v50
    %v53 = vadd.f32 %v51, 0.0
    %v54 = vadd.f32 %v52, 0.0
    %57 = vrot.lane.b32.xlu0 %v51, 127
    %v58 = vpop.permute.xlu0 %57
    %59 = vrot.lane.b32.xlu0 %v52, 127
    %v60 = vpop.permute.xlu0 %59
    %v63 = vadd.f32 %v53, %v58
    %v64 = vadd.f32 %v54, %v60
    %65 = vrot.lane.b32.xlu0 %v51, 126
    %v66 = vpop.permute.xlu0 %65
    %67 = vrot.lane.b32.xlu0 %v52, 126
    %v68 = vpop.permute.xlu0 %67
    %v71 = vadd.f32 %v63, %v66
    %v72 = vadd.f32 %v64, %v68
    %73 = vrot.lane.b32.xlu0 %v51, 125
    %v74 = vpop.permute.xlu0 %73
    %75 = vrot.lane.b32.xlu0 %v52, 125
    %v76 = vpop.permute.xlu0 %75
    %v79 = vadd.f32 %v71, %v74
    %v80 = vadd.f32 %v72, %v76
    %v81 = vadd.f32 %v79, 1e-10
    %v82 = vadd.f32 %v80, 1e-10
    %v83 = vrcp.pop %v81
    %v84 = vmul.f32 %v81, %v83
    %v85 = vsub.f32 1.0, %v84
    %v86 = vmul.f32 %v83, %v85
    %v87 = vadd.f32 %v83, %v86
    %vm88 = vweird.f32 %v81
    %vm89 = vweird.f32 %v83
    %vm90 = vmor %vm88, %vm89
    %v91 = vsel %vm90, %v83, %v87
    %v92 = vand.u32 2147483647, %v81
    %vm93 = vcmp.eq.f32.partialorder %v92, 8.507059e+37
    %v94 = vand.u32 %v81, 2147483648
    %v95 = vor.u32 1.1754944e-38, %v94
    %v96 = vsel %vm93, %v95, %v91
    %v97 = vmul.f32 1.0, %v96
    %v98 = vrcp.pop %v82
    %v99 = vmul.f32 %v82, %v98
    %v100 = vsub.f32 1.0, %v99
    %v101 = vmul.f32 %v98, %v100
    %v102 = vadd.f32 %v98, %v101
    %vm103 = vweird.f32 %v82
    %vm104 = vweird.f32 %v98
    %vm105 = vmor %vm103, %vm104
    %v106 = vsel %vm105, %v98, %v102
    %v107 = vand.u32 2147483647, %v82
    %vm108 = vcmp.eq.f32.partialorder %v107, 8.507059e+37
    %v109 = vand.u32 %v82, 2147483648
    %v110 = vor.u32 1.1754944e-38, %v109
    %v111 = vsel %vm108, %v110, %v106
    %v112 = vmul.f32 1.0, %v111
    %v113 = vmul.f32 %v51, %v97
    %v114 = vmul.f32 %v52, %v112
    %v115 = vadd.s32 %v15, 11
    %v116 = vadd.s32 %v16, 11
    %117 = vset.pattern.permute.xlu0 3
    %118 = vperm.xlu0 %117, %v115
    %v119 = vpop.permute.xlu0 %118
    %120 = vset.pattern.permute.xlu0 3
    %121 = vperm.xlu0 %120, %v116
    %v122 = vpop.permute.xlu0 %121
    %vm123 = vcmp.eq.s32.totalorder %v119, %v18
    %vm124 = vcmp.eq.s32.totalorder %v122, %v18
    %v125 = vsel %vm123, 1, 0
    %v126 = vsel %vm124, 1, 0
    %v127 = vcvt.s32.f32 %v125
    %v128 = vcvt.s32.f32 %v126
    %130 = vset.pattern.permute.xlu0 7
    %131 = vperm.xlu0 %130, %v113
    %v132 = vpop.permute.xlu0 %131
    %135 = vset.pattern.permute.xlu0 7
    %136 = vperm.xlu0 %135, %v114
    %v137 = vpop.permute.xlu0 %136
    %v139 = vmul.f32 %v132, %v127
    %v140 = vmul.f32 %v137, %v128
    %v141 = vadd.f32 %v45, %v139
    %v142 = vadd.f32 %v46, %v140
    %v143 = vadd.s32 %v15, 21
    %v144 = vadd.s32 %v16, 21
    %145 = vset.pattern.permute.xlu0 7
    %146 = vperm.xlu0 %145, %v143
    %v147 = vpop.permute.xlu0 %146
    %148 = vset.pattern.permute.xlu0 7
    %149 = vperm.xlu0 %148, %v144
    %v150 = vpop.permute.xlu0 %149
    %vm151 = vcmp.eq.s32.totalorder %v147, %v18
    %vm152 = vcmp.eq.s32.totalorder %v150, %v18
    %v153 = vsel %vm151, 1, 0
    %v154 = vsel %vm152, 1, 0
    %v155 = vcvt.s32.f32 %v153
    %v156 = vcvt.s32.f32 %v154
    %v157 = vmul.f32 %v132, %v155
    %v158 = vmul.f32 %v137, %v156
    %v159 = vadd.f32 %v141, %v157
    %v160 = vadd.f32 %v142, %v158
    %163 = vrot.lane.b32.xlu0 %v97, 1
    %v164 = vpop.permute.xlu0 %163
    %165 = vrot.lane.b32.xlu0 %v112, 1
    %v166 = vpop.permute.xlu0 %165
    %v169 = vmul.f32 %v51, %v164
    %v170 = vmul.f32 %v52, %v166
    %171 = vset.pattern.permute.xlu0 4
    %172 = vperm.xlu0 %171, %v115
    %v173 = vpop.permute.xlu0 %172
    %174 = vset.pattern.permute.xlu0 4
    %175 = vperm.xlu0 %174, %v116
    %v176 = vpop.permute.xlu0 %175
    %vm177 = vcmp.eq.s32.totalorder %v173, %v18
    %vm178 = vcmp.eq.s32.totalorder %v176, %v18
    %v179 = vsel %vm177, 1, 0
    %v180 = vsel %vm178, 1, 0
    %v181 = vcvt.s32.f32 %v179
    %v182 = vcvt.s32.f32 %v180
    %184 = vset.pattern.permute.xlu0 8
    %185 = vperm.xlu0 %184, %v169
    %v186 = vpop.permute.xlu0 %185
    %189 = vset.pattern.permute.xlu0 8
    %190 = vperm.xlu0 %189, %v170
    %v191 = vpop.permute.xlu0 %190
    %v193 = vmul.f32 %v186, %v181
    %v194 = vmul.f32 %v191, %v182
    %v195 = vadd.f32 %v159, %v193
    %v196 = vadd.f32 %v160, %v194
    %197 = vset.pattern.permute.xlu0 8
    %198 = vperm.xlu0 %197, %v143
    %v199 = vpop.permute.xlu0 %198
    %200 = vset.pattern.permute.xlu0 8
    %201 = vperm.xlu0 %200, %v144
    %v202 = vpop.permute.xlu0 %201
    %vm203 = vcmp.eq.s32.totalorder %v199, %v18
    %vm204 = vcmp.eq.s32.totalorder %v202, %v18
    %v205 = vsel %vm203, 1, 0
    %v206 = vsel %vm204, 1, 0
    %v207 = vcvt.s32.f32 %v205
    %v208 = vcvt.s32.f32 %v206
    %v209 = vmul.f32 %v186, %v207
    %v210 = vmul.f32 %v191, %v208
    %v211 = vadd.f32 %v195, %v209
    %v212 = vadd.f32 %v196, %v210
    %213 = vrot.lane.b32.xlu0 %v97, 2
    %v214 = vpop.permute.xlu0 %213
    %215 = vrot.lane.b32.xlu0 %v112, 2
    %v216 = vpop.permute.xlu0 %215
    %v219 = vmul.f32 %v51, %v214
    %v220 = vmul.f32 %v52, %v216
    %221 = vset.pattern.permute.xlu0 5
    %222 = vperm.xlu0 %221, %v115
    %v223 = vpop.permute.xlu0 %222
    %224 = vset.pattern.permute.xlu0 5
    %225 = vperm.xlu0 %224, %v116
    %v226 = vpop.permute.xlu0 %225
    %vm227 = vcmp.eq.s32.totalorder %v223, %v18
    %vm228 = vcmp.eq.s32.totalorder %v226, %v18
    %v229 = vsel %vm227, 1, 0
    %v230 = vsel %vm228, 1, 0
    %v231 = vcvt.s32.f32 %v229
    %v232 = vcvt.s32.f32 %v230
    %234 = vset.pattern.permute.xlu0 9
    %235 = vperm.xlu0 %234, %v219
    %v236 = vpop.permute.xlu0 %235
    %239 = vset.pattern.permute.xlu0 9
    %240 = vperm.xlu0 %239, %v220
    %v241 = vpop.permute.xlu0 %240
    %v243 = vmul.f32 %v236, %v231
    %v244 = vmul.f32 %v241, %v232
    %v245 = vadd.f32 %v211, %v243
    %v246 = vadd.f32 %v212, %v244
    %247 = vset.pattern.permute.xlu0 9
    %248 = vperm.xlu0 %247, %v143
    %v249 = vpop.permute.xlu0 %248
    %250 = vset.pattern.permute.xlu0 9
    %251 = vperm.xlu0 %250, %v144
    %v252 = vpop.permute.xlu0 %251
    %vm253 = vcmp.eq.s32.totalorder %v249, %v18
    %vm254 = vcmp.eq.s32.totalorder %v252, %v18
    %v255 = vsel %vm253, 1, 0
    %v256 = vsel %vm254, 1, 0
    %v257 = vcvt.s32.f32 %v255
    %v258 = vcvt.s32.f32 %v256
    %v259 = vmul.f32 %v236, %v257
    %v260 = vmul.f32 %v241, %v258
    %v261 = vadd.f32 %v245, %v259
    %v262 = vadd.f32 %v246, %v260
    %263 = vrot.lane.b32.xlu0 %v97, 3
    %v264 = vpop.permute.xlu0 %263
    %265 = vrot.lane.b32.xlu0 %v112, 3
    %v266 = vpop.permute.xlu0 %265
    %v269 = vmul.f32 %v51, %v264
    %v270 = vmul.f32 %v52, %v266
    %271 = vset.pattern.permute.xlu0 6
    %272 = vperm.xlu0 %271, %v115
    %v273 = vpop.permute.xlu0 %272
    %274 = vset.pattern.permute.xlu0 6
    %275 = vperm.xlu0 %274, %v116
    %v276 = vpop.permute.xlu0 %275
    %vm277 = vcmp.eq.s32.totalorder %v273, %v18
    %vm278 = vcmp.eq.s32.totalorder %v276, %v18
    %v279 = vsel %vm277, 1, 0
    %v280 = vsel %vm278, 1, 0
    %v281 = vcvt.s32.f32 %v279
    %v282 = vcvt.s32.f32 %v280
    %284 = vset.pattern.permute.xlu0 10
    %285 = vperm.xlu0 %284, %v269
    %v286 = vpop.permute.xlu0 %285
    %289 = vset.pattern.permute.xlu0 10
    %290 = vperm.xlu0 %289, %v270
    %v291 = vpop.permute.xlu0 %290
    %v293 = vmul.f32 %v286, %v281
    %v294 = vmul.f32 %v291, %v282
    %v295 = vadd.f32 %v261, %v293
    %v296 = vadd.f32 %v262, %v294
    %297 = vset.pattern.permute.xlu0 10
    %298 = vperm.xlu0 %297, %v143
    %v299 = vpop.permute.xlu0 %298
    %300 = vset.pattern.permute.xlu0 10
    %301 = vperm.xlu0 %300, %v144
    %v302 = vpop.permute.xlu0 %301
    %vm303 = vcmp.eq.s32.totalorder %v299, %v18
    %vm304 = vcmp.eq.s32.totalorder %v302, %v18
    %v305 = vsel %vm303, 1, 0
    %v306 = vsel %vm304, 1, 0
    %v307 = vcvt.s32.f32 %v305
    %v308 = vcvt.s32.f32 %v306
    %v309 = vmul.f32 %v286, %v307
    %v310 = vmul.f32 %v291, %v308
    %v311 = vadd.f32 %v295, %v309
    %v312 = vadd.f32 %v296, %v310
    %v313 = vld [vmem:[%s1] sm:$0xff]
    %v314 = vld [vmem:[%s1 + $0x8] sm:$0xff]
    %v315 = vld [vmem:[%s1 + $0x10] sm:$0xff]
    %v316 = vld [vmem:[%s1 + $0x18] sm:$0xff]
    %v317 = vld [vmem:[%s2] sm:$0x1]
    %v318 = vld [vmem:[%s2 + $0x1] sm:$0x1]
    %v319 = vcvt.s32.f32 %v15
    %v320 = vcvt.s32.f32 %v16
    %322 = vset.pattern.permute.xlu0 1
    %323 = vperm.xlu0 %322, %v319
    %v324 = vpop.permute.xlu0 %323
    %327 = vset.pattern.permute.xlu0 1
    %328 = vperm.xlu0 %327, %v320
    %v329 = vpop.permute.xlu0 %328
    %v331 = vperm.slane %v317, 0
    %v332 = vmul.f32 %v324, %v331
    %v333 = vmul.f32 %v329, %v331
    %v334 = vperm.slane %v318, 0
    %v335 = vadd.f32 %v332, %v334
    %v336 = vadd.f32 %v333, %v334
    %v337 = vand.u32 2147483647, %v335
    %vm338 = vcmp.le.f32.partialorder %v337, 0.7853982
    %vm339 = vcmp.lt.s32.totalorder %v335, 0
    %v340 = vand.u32 %v335, 2139095040
    %v341 = vshrl.u32 %v340, 23
    %v342 = vsub.s32 %v341, 127
    %v343 = vand.u32 2147483647, %v335
    %v344 = vand.u32 %v343, 8388607
    %v345 = vor.u32 %v344, 8388608
    %v346 = vsub.s32 0, %v345
    %v347 = vadd.s32 %v342, 1
    %vm348 = vcmp.gt.s32.totalorder %v347, 0
    %v349 = vsel %vm348, %v347, 0
    %v350 = vshrl.u32 %v349, 5
    %v351 = vand.u32 %v349, 31
    %v352 = vsub.s32 32, %v351
    %v353 = vshrl.u32 683565275, %v352
    %v354 = vshll.u32 683565275, %v351
    %v355 = vshrl.u32 2475754826, %v352
    %v356 = vor.u32 %v354, %v355
    %v357 = vshll.u32 2475754826, %v351
    %v358 = vshrl.u32 2131351028, %v352
    %v359 = vor.u32 %v357, %v358
    %v360 = vshll.u32 2131351028, %v351
    %v361 = vshrl.u32 2102212464, %v352
    %v362 = vor.u32 %v360, %v361
    %v363 = vshll.u32 2102212464, %v351
    %v364 = vshrl.u32 920167782, %v352
    %v365 = vor.u32 %v363, %v364
    %v366 = vshll.u32 920167782, %v351
    %v367 = vshrl.u32 1326507024, %v352
    %v368 = vor.u32 %v366, %v367
    %vm369 = vcmp.lt.s32.totalorder %v350, 1
    %vm370 = vcmp.lt.s32.totalorder %v350, 2
    %vm371 = vcmp.lt.s32.totalorder %v350, 3
    %vm372 = vcmp.lt.s32.totalorder %v350, 4
    %v373 = vsel %vm369, %v353, %v356
    %v374 = vsel %vm372, %v362, 2102212464
    %v375 = vsel %vm371, %v359, %v374
    %v376 = vsel %vm370, %v373, %v375
    %v377 = vsel %vm369, %v356, %v359
    %v378 = vsel %vm372, %v365, 920167782
    %v379 = vsel %vm371, %v362, %v378
    %v380 = vsel %vm370, %v377, %v379
    %v381 = vsel %vm369, %v359, %v362
    %v382 = vsel %vm372, %v368, 1326507024
    %v383 = vsel %vm371, %v365, %v382
    %v384 = vsel %vm370, %v381, %v383
    %v385 = vshll.u32 %v345, 8
    %v386 = vand.u32 %v385, 65535
    %v387 = vshrl.u32 %v385, 16
    %v388 = vand.u32 %v384, 65535
    %v389 = vshrl.u32 %v384, 16
    %v390 = vmul.u32 %v386, %v388
    %v391 = vmul.u32 %v386, %v389
    %v392 = vmul.u32 %v387, %v388
    %v393 = vmul.u32 %v387, %v389
    %v394 = vshll.u32 %v391, 16
    %v395 = vshrl.u32 %v391, 16
    %v396 = vshll.u32 %v392, 16
    %v397 = vshrl.u32 %v392, 16
    %vm398 = vc.u32 %v390, %v394
    %v399 = vsel %vm398, 1, 0
    %v400 = vadd.s32 %v390, %v394
    %v401 = vadd.s32 %v393, %v399
    %vm402 = vc.u32 %v400, %v396
    %v403 = vsel %vm402, 1, 0
    %v404 = vadd.s32 %v400, %v396
    %v405 = vadd.s32 %v401, %v403
    %v406 = vadd.s32 %v405, %v395
    %v407 = vadd.s32 %v406, %v397
    %v408 = vand.u32 %v385, 65535
    %v409 = vshrl.u32 %v385, 16
    %v410 = vand.u32 %v380, 65535
    %v411 = vshrl.u32 %v380, 16
    %v412 = vmul.u32 %v408, %v410
    %v413 = vmul.u32 %v408, %v411
    %v414 = vmul.u32 %v409, %v410
    %v415 = vmul.u32 %v409, %v411
    %v416 = vshll.u32 %v413, 16
    %v417 = vshrl.u32 %v413, 16
    %v418 = vshll.u32 %v414, 16
    %v419 = vshrl.u32 %v414, 16
    %vm420 = vc.u32 %v412, %v416
    %v421 = vsel %vm420, 1, 0
    %v422 = vadd.s32 %v412, %v416
    %v423 = vadd.s32 %v415, %v421
    %vm424 = vc.u32 %v422, %v418
    %v425 = vsel %vm424, 1, 0
    %v426 = vadd.s32 %v422, %v418
    %v427 = vadd.s32 %v423, %v425
    %v428 = vadd.s32 %v427, %v417
    %v429 = vadd.s32 %v428, %v419
    %v430 = vmul.u32 %v385, %v376
    %v431 = vadd.s32 %v407, %v426
    %vm432 = vc.u32 %v407, %v426
    %v433 = vadd.s32 %v429, 1
    %v434 = vsel %vm432, %v433, %v429
    %v435 = vadd.s32 %v430, %v434
    %v436 = vadd.s32 %v435, 536870912
    %v437 = vshrl.u32 %v436, 30
    %v438 = vshll.u32 %v437, 30
    %v439 = vsub.s32 %v435, %v438
    %vm440 = vcmp.lt.s32.totalorder %v439, 0
    %v441 = vsub.s32 0, %v439
    %v442 = vsel %vm440, %v441, %v439
    %v443 = vclz %v442
    %v444 = vsub.s32 %v443, 2
    %vm445 = vcmp.gt.s32.totalorder 0, %v444
    %v446 = vsel %vm445, 0, %v444
    %v447 = vsub.s32 32, %v446
    %v448 = vshll.u32 %v439, %v446
    %v449 = vshrl.u32 %v431, %v447
    %v450 = vor.u32 %v448, %v449
    %v451 = vsub.s32 4294967266, %v446
    %v452 = vadd.s32 %v451, 127
    %v453 = vshll.u32 %v452, 23
    %v454 = vor.u32 4788187, %v453
    %v455 = vand.u32 2147483647, %v454
    %v457 = vcvt.s32.f32 %v450
    %v458 = vmul.f32 %v457, %v455
    %v459 = vxor.u32 %v458, 2147483648
    %v460 = vsel %vm339, %v459, %v458
    %v461 = vsub.s32 4, %v437
    %v462 = vsel %vm339, %v461, %v437
    %v463 = vsel %vm338, %v335, %v460
    %v464 = vsel %vm338, 0, %v462
    %v465 = vmul.f32 %v463, %v463
    %v466 = vmul.f32 %v465, -0.001358992
    %v467 = vadd.f32 %v466, 0.041655596
    %v468 = vmul.f32 %v465, %v467
    %v469 = vadd.f32 %v468, -0.4999988
    %v470 = vmul.f32 %v465, %v469
    %v471 = vadd.f32 1.0, %v470
    %v472 = vmul.f32 %v463, %v463
    %v473 = vmul.f32 %v472, -0.00019511016
    %v474 = vadd.f32 %v473, 0.008332121
    %v475 = vmul.f32 %v472, %v474
    %v476 = vadd.f32 %v475, -0.16666654
    %v477 = vmul.f32 %v472, %v476
    %v478 = vadd.f32 %v477, 1.0
    %v479 = vmul.f32 %v478, %v463
    %vm480 = vweird.f32 %v335
    %v481 = vadd.s32 %v464, 3
    %v482 = vand.u32 %v481, 3
    %vm483 = vcmp.lt.s32.totalorder %v482, 2
    %vm484 = vcmp.eq.s32.totalorder %v482, 0
    %v485 = vxor.u32 %v479, 2147483648
    %v486 = vsel %vm484, %v471, %v485
    %vm487 = vcmp.eq.s32.totalorder %v482, 2
    %v488 = vxor.u32 %v471, 2147483648
    %v489 = vsel %vm487, %v488, %v479
    %v490 = vsel %vm483, %v486, %v489
    %v491 = vsel %vm480, nan, %v490
    %v492 = vand.u32 2147483647, %v336
    %vm493 = vcmp.le.f32.partialorder %v492, 0.7853982
    %vm494 = vcmp.lt.s32.totalorder %v336, 0
    %v495 = vand.u32 %v336, 2139095040
    %v496 = vshrl.u32 %v495, 23
    %v497 = vsub.s32 %v496, 127
    %v498 = vand.u32 2147483647, %v336
    %v499 = vand.u32 %v498, 8388607
    %v500 = vor.u32 %v499, 8388608
    %v501 = vsub.s32 0, %v500
    %v502 = vadd.s32 %v497, 1
    %vm503 = vcmp.gt.s32.totalorder %v502, 0
    %v504 = vsel %vm503, %v502, 0
    %v505 = vshrl.u32 %v504, 5
    %v506 = vand.u32 %v504, 31
    %v507 = vsub.s32 32, %v506
    %v508 = vshrl.u32 683565275, %v507
    %v509 = vshll.u32 683565275, %v506
    %v510 = vshrl.u32 2475754826, %v507
    %v511 = vor.u32 %v509, %v510
    %v512 = vshll.u32 2475754826, %v506
    %v513 = vshrl.u32 2131351028, %v507
    %v514 = vor.u32 %v512, %v513
    %v515 = vshll.u32 2131351028, %v506
    %v516 = vshrl.u32 2102212464, %v507
    %v517 = vor.u32 %v515, %v516
    %v518 = vshll.u32 2102212464, %v506
    %v519 = vshrl.u32 920167782, %v507
    %v520 = vor.u32 %v518, %v519
    %v521 = vshll.u32 920167782, %v506
    %v522 = vshrl.u32 1326507024, %v507
    %v523 = vor.u32 %v521, %v522
    %vm524 = vcmp.lt.s32.totalorder %v505, 1
    %vm525 = vcmp.lt.s32.totalorder %v505, 2
    %vm526 = vcmp.lt.s32.totalorder %v505, 3
    %vm527 = vcmp.lt.s32.totalorder %v505, 4
    %v528 = vsel %vm524, %v508, %v511
    %v529 = vsel %vm527, %v517, 2102212464
    %v530 = vsel %vm526, %v514, %v529
    %v531 = vsel %vm525, %v528, %v530
    %v532 = vsel %vm524, %v511, %v514
    %v533 = vsel %vm527, %v520, 920167782
    %v534 = vsel %vm526, %v517, %v533
    %v535 = vsel %vm525, %v532, %v534
    %v536 = vsel %vm524, %v514, %v517
    %v537 = vsel %vm527, %v523, 1326507024
    %v538 = vsel %vm526, %v520, %v537
    %v539 = vsel %vm525, %v536, %v538
    %v540 = vshll.u32 %v500, 8
    %v541 = vand.u32 %v540, 65535
    %v542 = vshrl.u32 %v540, 16
    %v543 = vand.u32 %v539, 65535
    %v544 = vshrl.u32 %v539, 16
    %v545 = vmul.u32 %v541, %v543
    %v546 = vmul.u32 %v541, %v544
    %v547 = vmul.u32 %v542, %v543
    %v548 = vmul.u32 %v542, %v544
    %v549 = vshll.u32 %v546, 16
    %v550 = vshrl.u32 %v546, 16
    %v551 = vshll.u32 %v547, 16
    %v552 = vshrl.u32 %v547, 16
    %vm553 = vc.u32 %v545, %v549
    %v554 = vsel %vm553, 1, 0
    %v555 = vadd.s32 %v545, %v549
    %v556 = vadd.s32 %v548, %v554
    %vm557 = vc.u32 %v555, %v551
    %v558 = vsel %vm557, 1, 0
    %v559 = vadd.s32 %v555, %v551
    %v560 = vadd.s32 %v556, %v558
    %v561 = vadd.s32 %v560, %v550
    %v562 = vadd.s32 %v561, %v552
    %v563 = vand.u32 %v540, 65535
    %v564 = vshrl.u32 %v540, 16
    %v565 = vand.u32 %v535, 65535
    %v566 = vshrl.u32 %v535, 16
    %v567 = vmul.u32 %v563, %v565
    %v568 = vmul.u32 %v563, %v566
    %v569 = vmul.u32 %v564, %v565
    %v570 = vmul.u32 %v564, %v566
    %v571 = vshll.u32 %v568, 16
    %v572 = vshrl.u32 %v568, 16
    %v573 = vshll.u32 %v569, 16
    %v574 = vshrl.u32 %v569, 16
    %vm575 = vc.u32 %v567, %v571
    %v576 = vsel %vm575, 1, 0
    %v577 = vadd.s32 %v567, %v571
    %v578 = vadd.s32 %v570, %v576
    %vm579 = vc.u32 %v577, %v573
    %v580 = vsel %vm579, 1, 0
    %v581 = vadd.s32 %v577, %v573
    %v582 = vadd.s32 %v578, %v580
    %v583 = vadd.s32 %v582, %v572
    %v584 = vadd.s32 %v583, %v574
    %v585 = vmul.u32 %v540, %v531
    %v586 = vadd.s32 %v562, %v581
    %vm587 = vc.u32 %v562, %v581
    %v588 = vadd.s32 %v584, 1
    %v589 = vsel %vm587, %v588, %v584
    %v590 = vadd.s32 %v585, %v589
    %v591 = vadd.s32 %v590, 536870912
    %v592 = vshrl.u32 %v591, 30
    %v593 = vshll.u32 %v592, 30
    %v594 = vsub.s32 %v590, %v593
    %vm595 = vcmp.lt.s32.totalorder %v594, 0
    %v596 = vsub.s32 0, %v594
    %v597 = vsel %vm595, %v596, %v594
    %v598 = vclz %v597
    %v599 = vsub.s32 %v598, 2
    %vm600 = vcmp.gt.s32.totalorder 0, %v599
    %v601 = vsel %vm600, 0, %v599
    %v602 = vsub.s32 32, %v601
    %v603 = vshll.u32 %v594, %v601
    %v604 = vshrl.u32 %v586, %v602
    %v605 = vor.u32 %v603, %v604
    %v606 = vsub.s32 4294967266, %v601
    %v607 = vadd.s32 %v606, 127
    %v608 = vshll.u32 %v607, 23
    %v609 = vor.u32 4788187, %v608
    %v610 = vand.u32 2147483647, %v609
    %v612 = vcvt.s32.f32 %v605
    %v613 = vmul.f32 %v612, %v610
    %v614 = vxor.u32 %v613, 2147483648
    %v615 = vsel %vm494, %v614, %v613
    %v616 = vsub.s32 4, %v592
    %v617 = vsel %vm494, %v616, %v592
    %v618 = vsel %vm493, %v336, %v615
    %v619 = vsel %vm493, 0, %v617
    %v620 = vmul.f32 %v618, %v618
    %v621 = vmul.f32 %v620, -0.001358992
    %v622 = vadd.f32 %v621, 0.041655596
    %v623 = vmul.f32 %v620, %v622
    %v624 = vadd.f32 %v623, -0.4999988
    %v625 = vmul.f32 %v620, %v624
    %v626 = vadd.f32 1.0, %v625
    %v627 = vmul.f32 %v618, %v618
    %v628 = vmul.f32 %v627, -0.00019511016
    %v629 = vadd.f32 %v628, 0.008332121
    %v630 = vmul.f32 %v627, %v629
    %v631 = vadd.f32 %v630, -0.16666654
    %v632 = vmul.f32 %v627, %v631
    %v633 = vadd.f32 %v632, 1.0
    %v634 = vmul.f32 %v633, %v618
    %vm635 = vweird.f32 %v336
    %v636 = vadd.s32 %v619, 3
    %v637 = vand.u32 %v636, 3
    %vm638 = vcmp.lt.s32.totalorder %v637, 2
    %vm639 = vcmp.eq.s32.totalorder %v637, 0
    %v640 = vxor.u32 %v634, 2147483648
    %v641 = vsel %vm639, %v626, %v640
    %vm642 = vcmp.eq.s32.totalorder %v637, 2
    %v643 = vxor.u32 %v626, 2147483648
    %v644 = vsel %vm642, %v643, %v634
    %v645 = vsel %vm638, %v641, %v644
    %v646 = vsel %vm635, nan, %v645
    %vm647 = vcmask 261120
    %v649 = vsel %vm647, %v311, 0
    %v652 = vsel %vm647, %v312, 0
    %654 = vmatpush.msra.mxu0 0.0
    %655 = vmatpush.msra.mxu0 0.0
    %656 = vmatpush.msra.mxu0 0.0
    %657 = vmatpush.msra.mxu0 0.0
    %658 = vmatpush.msra.mxu0 0.0
    %659 = vmatpush.msra.mxu0 0.0
    %660 = vmatpush.msra.mxu0 0.0
    %661 = vmatpush.msra.mxu0 0.0
    %662 = vmatpush.msra.mxu0 0.0
    %663 = vmatpush.msra.mxu0 0.0
    %664 = vmatpush.msra.mxu0 0.0
    %665 = vmatpush.msra.mxu0 0.0
    %666 = vmatpush.msra.mxu0 %v316
    %667 = vmatpush.msra.mxu0 %v315
    %668 = vmatpush.msra.mxu0 %v314
    %669 = vmatpush.msra.mxu0 %v313
    %670 = vmatmul.f32.gmra.mxu0 %v649
    %v671 = vpop.f32.mrf.mxu0
    %v672 = vadd.f32 %v491, %v671
    %673 = vmatmul.f32.gmra.mxu0 %v652
    %v674 = vpop.f32.mrf.mxu0
    %v675 = vadd.f32 %v646, %v674
    %676 = vdwg.mxu0
    %vm677 = vcmask 523264
    %678 = vst.msk [vmem:[#allocation2] sm:$0xff] %vm677, %v672
    %679 = vst.msk [vmem:[#allocation2 + $0x8] sm:$0xff] %vm677, %v675
    // Predicated region
    $region14: #{_nucleic_acid_embedding_impl.1} parent=1 // pred_check
      _
    $region15: #{_nucleic_acid_embedding_impl.1} parent=1 // pred_check_branch
      %681 = sbr.rel (0) target = $region17
    $region16: #{_nucleic_acid_embedding_impl.1} parent=1 // pred_region
      %683 = vsyncadd [#allocation3], 0
      %s684 = sshll.u32 [#allocation2], 4
      %s685 = int_to_ptr.vmem [resolvable:$true] %s684
      %s686 = sshll.u32 %s3, 4
      %s687 = int_to_ptr.hbm [resolvable:$true] %s686
      %692 = dma.vmem_to_hbm [thread:$0]  %s685, 256, %s687, [#allocation3], 128, 128, 8
    $region17: #{_nucleic_acid_embedding_impl.1} parent=1 // pred_fallthru
      _
    // Predicated region
    $region18: #{_nucleic_acid_embedding_impl.1} parent=1 // pred_check
      _
    $region19: #{_nucleic_acid_embedding_impl.1} parent=1 // pred_check_branch
      %694 = sbr.rel (0) target = $region21
    $region20: #{_nucleic_acid_embedding_impl.1} parent=1 // pred_region
      %696 = dma.done [#allocation3], 256
    $region21: #{_nucleic_acid_embedding_impl.1} parent=1 // pred_fallthru
      _
    %697 = vsyncpa [#allocation3], 1

</llo_original>
